<compile_context>
chip_gen: v5e
topology: v5e:2x2
jax: 0.10.0
libtpu: 0.0.40
codegen_flags: <defaults>
</compile_context>

<pallas_src>
import jax
import jax.numpy as jnp
from jax.experimental import pallas as pl
from jax.experimental.pallas import tpu as pltpu


def cp_attention_kernel(rep_ref, w_ref, fcw_ref, fcb_ref, out_ref):
    # rep_ref block: (TB, S, H) native dtype; w_ref: (1, H); fcw_ref: (H, C);
    # fcb_ref: (1, C); out_ref block: (TB, C) f32.
    rep = rep_ref[...].astype(jnp.float32)                  # (TB, S, H)
    m_act = jnp.tanh(rep)                                    # tanh1 (EUP)
    # attention logits: reduce over hidden (lane axis) -> (TB, S)
    logits = jnp.sum(m_act * w_ref[...], axis=-1)
    # softmax over the bag/sequence axis (torch dim=1), per bag-row
    lmax = jnp.max(logits, axis=1, keepdims=True)            # (TB, 1)
    e = jnp.exp(logits - lmax)                               # (TB, S)
    denom = jnp.sum(e, axis=1, keepdims=True)                # (TB, 1)
    alpha = e * pl.reciprocal(denom, approx=True)            # (TB, S), EUP recip
    # weighted pooling over S on the VPU (sublane-axis sum; plenty of VALU slack)
    pooled = jnp.sum(rep * alpha[:, :, None], axis=1)        # (TB, H) f32
    h = jnp.maximum(pooled, 0.0)                             # ReLU
    # final linear layer on the MXU
    out = jnp.dot(h, fcw_ref[...], preferred_element_type=jnp.float32) + fcb_ref[...]
    out_ref[...] = out.astype(out_ref.dtype)                 # (TB, C)


def _vmem_capacity_bytes():
    try:
        return int(pltpu.get_tpu_info().vmem_capacity_bytes)
    except Exception:
        return 64 * 1024 * 1024  # conservative (v7x-sized) fallback


def _pick_block_b(B, S, H, itemsize, vmem_bytes, block_b=None):
    """Choose bags-per-block TB.

    Targets a ~8 MiB rep block on 128 MiB-VMEM parts (v5e/v6e) and ~4 MiB on
    64 MiB parts (v7x); keeps TB a multiple of 8 (sublane floor for the (TB, C)
    output tile) unless a single block covers the whole batch, and caps TB so
    the grid has >= 2 steps when the batch allows it (v7x megacore sharding).
    """
    if block_b is None:
        target_bytes = (8 if vmem_bytes >= 100 * 1024 * 1024 else 4) * 1024 * 1024
        tb = max(1, target_bytes // (S * H * itemsize))
        tb = min(tb, 1024)
    else:
        tb = block_b
    if B > 8:
        # Guarantee >= 2 grid steps so both v7x TensorCores get work.
        tb = min(tb, max(8, (pl.cdiv(B, 2) // 8) * 8))
    if tb >= B:
        return B                      # single block spans the whole batch
    tb = max(8, (tb // 8) * 8)        # sublane-aligned block (>= 8 rows)
    if tb >= B:
        return B
    return tb


def cp_attention(rep, w, fc_w_t, fc_b, *, block_b=None):
    """rep: (B,S,H), w: (H,), fc_w_t: (H,C), fc_b: (C,) -> (B,C) f32."""
    B, S, H = rep.shape
    C = fc_b.shape[-1]
    itemsize = jnp.dtype(rep.dtype).itemsize

    vmem_cap = _vmem_capacity_bytes()
    tb = _pick_block_b(B, S, H, itemsize, vmem_cap, block_b)
    num_blocks = pl.cdiv(B, tb)

    # Small params only (a few KiB) — casting these does not touch the rep stream.
    w2 = w.reshape(1, H).astype(jnp.float32)
    fcw = fc_w_t.astype(jnp.float32)
    fcb2 = fc_b.reshape(1, C).astype(jnp.float32)

    # VMEM budget: rep block + tanh intermediate + double-buffered input, with
    # headroom; never request more than the physical capacity.
    block_bytes = tb * S * H * itemsize
    vmem_limit = int(min(vmem_cap, max(32 * 1024 * 1024, 5 * block_bytes)))

    # Advisory cost: kernel is HBM-bound on the rep stream.
    cost = pl.CostEstimate(
        flops=int(4 * B * S * H + 2 * B * H * C + 8 * B * S),
        transcendentals=int(B * S * H + B * S + B),
        bytes_accessed=int(itemsize * B * S * H + 4 * (H + H * C + C + B * C)),
    )

    return pl.pallas_call(
        cp_attention_kernel,
        out_shape=jax.ShapeDtypeStruct((B, C), jnp.float32),
        grid_spec=pltpu.PrefetchScalarGridSpec(
            num_scalar_prefetch=0,
            grid=(num_blocks,),
            in_specs=[
                pl.BlockSpec((tb, S, H), lambda b: (b, 0, 0)),  # TB bags per step
                pl.BlockSpec((1, H), lambda b: (0, 0)),         # attention vector w
                pl.BlockSpec((H, C), lambda b: (0, 0)),         # fc weight (transposed)
                pl.BlockSpec((1, C), lambda b: (0, 0)),         # fc bias
            ],
            out_specs=pl.BlockSpec((tb, C), lambda b: (b, 0)),
        ),
        compiler_params=pltpu.CompilerParams(
            dimension_semantics=("parallel",),   # batch axis shards across TCs (v7x)
            vmem_limit_bytes=vmem_limit,
        ),
        cost_estimate=cost,
    )(rep, w2, fcw, fcb2)


def cp_attention_ref(rep, w, fc_w_t, fc_b):
    """Pure-JAX reference mirroring the torch forward (f32 compute)."""
    rep = rep.astype(jnp.float32)
    M = jnp.tanh(rep)
    logits = jnp.einsum("bsh,h->bs", M, w)
    alpha = jax.nn.softmax(logits, axis=1)[..., None]
    pooled = jnp.sum(rep * alpha, axis=1)
    h = jax.nn.relu(pooled)
    return h @ fc_w_t + fc_b


if __name__ == "__main__":
    # TODO(synk): the optional attention-weight dump to a text file (when
    # `self.args` exists) is debug-only host I/O and is not implemented.
    B, S, H, C = 2, 8, 32, 4  # batch, bag size, hidden_size, num_class

    key = jax.random.PRNGKey(0)
    k_rep, k_w, k_fcw, k_fcb = jax.random.split(key, 4)

    rep = jax.random.normal(k_rep, (B, S, H), dtype=jnp.float32)
    # nn.Parameter(torch.zeros(hidden_size)) in __init__; use small deterministic
    # values so the softmax path is exercised non-trivially.
    w = 0.1 * jax.random.normal(k_w, (H,), dtype=jnp.float32)
    # nn.Linear(hidden_size, num_class): weight (C, H), bias (C).  Pass weight.T.
    fc_w_t = 0.1 * jax.random.normal(k_fcw, (H, C), dtype=jnp.float32)
    fc_b = 0.1 * jax.random.normal(k_fcb, (C,), dtype=jnp.float32)

    out = jax.block_until_ready(cp_attention(rep, w, fc_w_t, fc_b))
    ref = cp_attention_ref(rep, w, fc_w_t, fc_b)
    assert out.shape == (B, C)
    assert bool(jnp.all(jnp.isfinite(out)))
    # approx EUP reciprocal in the softmax -> slightly looser tolerance.
    assert jnp.allclose(out, ref, atol=5e-3, rtol=5e-3), (out, ref)

    # Multi-step grid + ragged tail path (B not a multiple of TB, no wrapper pad).
    B2 = 20
    rep2 = jax.random.normal(k_rep, (B2, S, H), dtype=jnp.float32)
    out2 = jax.block_until_ready(cp_attention(rep2, w, fc_w_t, fc_b, block_b=8))
    ref2 = cp_attention_ref(rep2, w, fc_w_t, fc_b)
    assert out2.shape == (B2, C)
    assert jnp.allclose(out2, ref2, atol=5e-3, rtol=5e-3), (out2, ref2)

    # Native-dtype (bf16) rep streamed directly, cast to f32 inside the kernel.
    rep3 = rep2.astype(jnp.bfloat16)
    out3 = jax.block_until_ready(cp_attention(rep3, w, fc_w_t, fc_b, block_b=8))
    ref3 = cp_attention_ref(rep3, w, fc_w_t, fc_b)
    assert out3.shape == (B2, C)
    assert jnp.allclose(out3, ref3, atol=2e-2, rtol=2e-2), (out3, ref3)

    print("KERNEL_OK")
</pallas_src>

<mosaic_0001>
module attributes {stable_mosaic.version = 11 : i64} {
  func.func @cp_attention_kernel(%arg0: i32, %arg1: memref<2x8x32xf32, #tpu.memory_space<vmem>>, %arg2: memref<1x32xf32, #tpu.memory_space<vmem>>, %arg3: memref<32x4xf32, #tpu.memory_space<vmem>>, %arg4: memref<1x4xf32, #tpu.memory_space<vmem>>, %arg5: memref<2x4xf32, #tpu.memory_space<vmem>>) attributes {dimension_semantics = [#tpu.dimension_semantics<parallel>], iteration_bounds = array<i64: 1>, scalar_prefetch = 0 : i64, scratch_operands = 0 : i64, tpu.core_type = #tpu.core_type<tc>, window_params = [{transform_indices = @transform_0, window_bounds = array<i64: 2, 8, 32>}, {pipeline_mode = #tpu.pipeline_mode<synchronous>, transform_indices = @transform_1, window_bounds = array<i64: 1, 32>}, {pipeline_mode = #tpu.pipeline_mode<synchronous>, transform_indices = @transform_2, window_bounds = array<i64: 32, 4>}, {pipeline_mode = #tpu.pipeline_mode<synchronous>, transform_indices = @transform_3, window_bounds = array<i64: 1, 4>}, {transform_indices = @transform_4, window_bounds = array<i64: 2, 4>}]} {
    %c0 = arith.constant 0 : index
    %c0_0 = arith.constant 0 : index
    %c0_1 = arith.constant 0 : index
    %0 = vector.load %arg1[%c0, %c0_0, %c0_1] : memref<2x8x32xf32, #tpu.memory_space<vmem>>, vector<2x8x32xf32>
    %1 = math.tanh %0 : vector<2x8x32xf32>
    %c0_2 = arith.constant 0 : index
    %c0_3 = arith.constant 0 : index
    %2 = vector.load %arg2[%c0_2, %c0_3] : memref<1x32xf32, #tpu.memory_space<vmem>>, vector<1x32xf32>
    %3 = vector.shape_cast %2 : vector<1x32xf32> to vector<1x1x32xf32>
    %4 = vector.broadcast %3 : vector<1x1x32xf32> to vector<2x8x32xf32>
    %5 = arith.mulf %1, %4 : vector<2x8x32xf32>
    %cst = arith.constant dense<0.000000e+00> : vector<2x8xf32>
    %6 = vector.multi_reduction <add>, %5, %cst [2] : vector<2x8x32xf32> to vector<2x8xf32>
    %cst_4 = arith.constant dense<0xFF800000> : vector<2xf32>
    %7 = vector.multi_reduction <maximumf>, %6, %cst_4 [1] : vector<2x8xf32> to vector<2xf32>
    %8 = vector.shape_cast %7 : vector<2xf32> to vector<2x1xf32>
    %9 = vector.broadcast %8 : vector<2x1xf32> to vector<2x8xf32>
    %10 = arith.subf %6, %9 : vector<2x8xf32>
    %11 = math.exp %10 : vector<2x8xf32>
    %cst_5 = arith.constant dense<0.000000e+00> : vector<2xf32>
    %12 = vector.multi_reduction <add>, %11, %cst_5 [1] : vector<2x8xf32> to vector<2xf32>
    %13 = vector.shape_cast %12 : vector<2xf32> to vector<2x1xf32>
    %14 = tpu.reciprocal %13 {approx = true} : vector<2x1xf32> -> vector<2x1xf32>
    %15 = vector.broadcast %14 : vector<2x1xf32> to vector<2x8xf32>
    %16 = arith.mulf %11, %15 : vector<2x8xf32>
    %17 = vector.shape_cast %16 : vector<2x8xf32> to vector<2x8x1xf32>
    %18 = vector.broadcast %17 : vector<2x8x1xf32> to vector<2x8x32xf32>
    %19 = arith.mulf %0, %18 : vector<2x8x32xf32>
    %cst_6 = arith.constant dense<0.000000e+00> : vector<2x32xf32>
    %20 = vector.multi_reduction <add>, %19, %cst_6 [1] : vector<2x8x32xf32> to vector<2x32xf32>
    %cst_7 = arith.constant 0.000000e+00 : f32
    %21 = vector.broadcast %cst_7 : f32 to vector<2x32xf32>
    %22 = arith.maximumf %20, %21 : vector<2x32xf32>
    %c0_8 = arith.constant 0 : index
    %c0_9 = arith.constant 0 : index
    %23 = vector.load %arg3[%c0_8, %c0_9] : memref<32x4xf32, #tpu.memory_space<vmem>>, vector<32x4xf32>
    %cst_10 = arith.constant dense<0.000000e+00> : vector<2x4xf32>
    %24 = tpu.matmul %22, %23, %cst_10 {dimension_numbers = #tpu.dot_dimension_numbers<[1], [0], [0], [1], [0, 0, 1, 1], [], []>} : vector<2x32xf32>, vector<32x4xf32>, vector<2x4xf32> -> vector<2x4xf32>
    %c0_11 = arith.constant 0 : index
    %c0_12 = arith.constant 0 : index
    %25 = vector.load %arg4[%c0_11, %c0_12] : memref<1x4xf32, #tpu.memory_space<vmem>>, vector<1x4xf32>
    %26 = vector.broadcast %25 : vector<1x4xf32> to vector<2x4xf32>
    %27 = arith.addf %24, %26 : vector<2x4xf32>
    %c0_13 = arith.constant 0 : index
    %c0_14 = arith.constant 0 : index
    %28 = vector.load %arg5[%c0_13, %c0_14] : memref<2x4xf32, #tpu.memory_space<vmem>>, vector<2x4xf32>
    tpu.vector_store %arg5[%c0_13, %c0_14], %27 {strides = array<i32>} : memref<2x4xf32, #tpu.memory_space<vmem>>, vector<2x4xf32>,
    return
  }
  func.func @transform_0(%arg0: i32) -> (i32, i32, i32) {
    %c0_i32 = arith.constant 0 : i32
    %c0_i32_0 = arith.constant 0 : i32
    %c0_i32_1 = arith.constant 0 : i32
    return %arg0, %c0_i32, %c0_i32_0 : i32, i32, i32
  }
  func.func @transform_1(%arg0: i32) -> (i32, i32) {
    %c0_i32 = arith.constant 0 : i32
    %c0_i32_0 = arith.constant 0 : i32
    %c0_i32_1 = arith.constant 0 : i32
    return %c0_i32, %c0_i32_0 : i32, i32
  }
  func.func @transform_2(%arg0: i32) -> (i32, i32) {
    %c0_i32 = arith.constant 0 : i32
    %c0_i32_0 = arith.constant 0 : i32
    %c0_i32_1 = arith.constant 0 : i32
    return %c0_i32, %c0_i32_0 : i32, i32
  }
  func.func @transform_3(%arg0: i32) -> (i32, i32) {
    %c0_i32 = arith.constant 0 : i32
    %c0_i32_0 = arith.constant 0 : i32
    %c0_i32_1 = arith.constant 0 : i32
    return %c0_i32, %c0_i32_0 : i32, i32
  }
  func.func @transform_4(%arg0: i32) -> (i32, i32) {
    %c0_i32 = arith.constant 0 : i32
    %c0_i32_0 = arith.constant 0 : i32
    return %arg0, %c0_i32 : i32, i32
  }
}

</mosaic_0001>

<llo_original>
// kernel: tpu_custom_call.1
$region0: #{tpu_custom_call.1}
  #allocation0 [shape = 'u32[]', space=smem, size = 0x4, offset = 0x4, fixed_abs, tag = 'smem constant byte address 0x4 - core index']
  #allocation1 [shape = 'u32[72,128]{1,0:T(1,128)}', space=vmem, size = 0x9000, scoped, tag = 'internal scratch']
  %s0 = inlined_call_operand.vmem [shape: f32[2,8,32], index: 0, kind: input, shape index: {}]
  %s1 = inlined_call_operand.vmem [shape: f32[1,32], index: 1, kind: input, shape index: {}]
  %s2 = inlined_call_operand.vmem [shape: f32[32,4], index: 2, kind: input, shape index: {}]
  %s3 = inlined_call_operand.vmem [shape: f32[1,4], index: 3, kind: input, shape index: {}]
  %s4 = inlined_call_operand.hbm [shape: f32[2,4], index: 4, kind: output, shape index: {}]
  %s5 = sld [smem:[#allocation0]]
  $region26: #{tpu_custom_call.1} parent=0
    _
  %s7 = ssub.s32 1, %s5
  %s8 = scalar_select 0, %s7, %s5
  $region1: #{tpu_custom_call.1} parent=0
    #allocation2 [shape = 'u8[1024]{0}', space=vmem, size = 0x400, scoped, tag = 'output window, operand 0, single buffered']
    #allocation3 [shape = 's32[1]{0}', space=sflag, size = 0x4, scoped, tag = 'scoped memory for tpu_custom_call.1']
    %9 = vsyncpa [#allocation3], 0
    // Predicated region
    $region2: #{tpu_custom_call.1} parent=1 // pred_check
      _
    $region3: #{tpu_custom_call.1} parent=1 // pred_check_branch
      %11 = sbr.rel (0) target = $region5
    $region4: #{tpu_custom_call.1} parent=1 // pred_region
      _
    $region5: #{tpu_custom_call.1} parent=1 // pred_fallthru
      _
    // Predicated region
    $region6: #{tpu_custom_call.1} parent=1 // pred_check
      _
    $region7: #{tpu_custom_call.1} parent=1 // pred_check_branch
      %13 = sbr.rel (0) target = $region9
    $region8: #{tpu_custom_call.1} parent=1 // pred_region
      _
    $region9: #{tpu_custom_call.1} parent=1 // pred_fallthru
      _
    // Predicated region
    $region10: #{tpu_custom_call.1} parent=1 // pred_check
      _
    $region11: #{tpu_custom_call.1} parent=1 // pred_check_branch
      %15 = sbr.rel (0) target = $region13
    $region12: #{tpu_custom_call.1} parent=1 // pred_region
      _
    $region13: #{tpu_custom_call.1} parent=1 // pred_fallthru
      _
    // Predicated region
    $region14: #{tpu_custom_call.1} parent=1 // pred_check
      _
    $region15: #{tpu_custom_call.1} parent=1 // pred_check_branch
      %17 = sbr.rel (0) target = $region17
    $region16: #{tpu_custom_call.1} parent=1 // pred_region
      _
    $region17: #{tpu_custom_call.1} parent=1 // pred_fallthru
      _
    %v18 = vld [vmem:[%s0] sm:$0xff]
    %v19 = vld [vmem:[%s0 + $0x8] sm:$0xff]
    %v20 = vtanh.pop %v18
    %v21 = vtanh.pop %v19
    %v22 = vld [vmem:[%s1] sm:$0x1]
    %v24 = vperm.slane %v22, 0
    %v26 = vmul.f32 %v20, %v24
    %v27 = vmul.f32 %v21, %v24
    %vm28 = vcmask 261120
    %v29 = vsel %vm28, %v26, 0.0
    %30 = vadd.xlane.f32.xlu0 %v29
    %v31 = vpop.xlane.xlu0 %30
    %v32 = vsel %vm28, %v27, 0.0
    %33 = vadd.xlane.f32.xlu0 %v32
    %v34 = vpop.xlane.xlu0 %33
    %v37 = vlaneseq
    %v38 = vand.u32 %v37, 127
    %v39 = vperm.slane %v31, %v38
    %v40 = vperm.slane %v34, %v38
    %vm41 = vcmask 1041409
    %v42 = vsel %vm41, %v40, %v39
    %vm44 = vcmask 58368
    %v45 = vsel %vm44, %v42, -inf
    %46 = vmax.xlane.f32.xlu0 %v45
    %v47 = vpop.xlane.xlu0 %46
    %v49 = vperm.slane %v47, 0
    %v50 = vperm.slane %v47, 1
    %v53 = vsub.f32 %v31, %v49
    %v54 = vsub.f32 %v34, %v50
    %v55 = vmul.f32 %v53, 1.442695
    %v56 = vpow.pop %v55
    %v57 = vmul.f32 %v54, 1.442695
    %v58 = vpow.pop %v57
    %61 = vset.pattern.permute.xlu0 0
    %62 = vperm.xlu0 %61, %v56
    %v63 = vpop.permute.xlu0 %62
    %64 = vset.pattern.permute.xlu0 0
    %65 = vperm.xlu0 %64, %v58
    %v66 = vpop.permute.xlu0 %65
    %v67 = vperm.slane %v63, %v38
    %v68 = vperm.slane %v66, %v38
    %v69 = vsel %vm41, %v68, %v67
    %v71 = vsel %vm44, %v69, 0.0
    %72 = vadd.xlane.f32.xlu0 %v71
    %v73 = vpop.xlane.xlu0 %72
    %v74 = vrcp.pop %v73
    %v76 = vperm.slane %v74, 0
    %v77 = vperm.slane %v74, 1
    %v80 = vmul.f32 %v56, %v76
    %v81 = vmul.f32 %v58, %v77
    %83 = vset.pattern.permute.xlu0 0
    %84 = vperm.xlu0 %83, %v80
    %v85 = vpop.permute.xlu0 %84
    %88 = vset.pattern.permute.xlu0 0
    %89 = vperm.xlu0 %88, %v81
    %v90 = vpop.permute.xlu0 %89
    %v92 = vmul.f32 %v18, %v85
    %v93 = vmul.f32 %v19, %v90
    %v94 = vsel %vm28, %v92, 0.0
    %v95 = vrot.slane %v94, 4
    %v96 = vadd.f32 %v94, %v95
    %v97 = vrot.slane %v96, 2
    %v98 = vadd.f32 %v96, %v97
    %v99 = vrot.slane %v98, 1
    %v100 = vadd.f32 %v98, %v99
    %v101 = vsel %vm28, %v93, 0.0
    %v102 = vrot.slane %v101, 4
    %v103 = vadd.f32 %v101, %v102
    %v104 = vrot.slane %v103, 2
    %v105 = vadd.f32 %v103, %v104
    %v106 = vrot.slane %v105, 1
    %v107 = vadd.f32 %v105, %v106
    %v108 = vmax.f32 %v100, 0.0
    %v109 = vmax.f32 %v107, 0.0
    %v110 = vld [vmem:[%s2] sm:$0xff]
    %v111 = vld [vmem:[%s2 + $0x8] sm:$0xff]
    %v112 = vld [vmem:[%s2 + $0x10] sm:$0xff]
    %v113 = vld [vmem:[%s2 + $0x18] sm:$0xff]
    %v114 = vld [vmem:[%s3] sm:$0x1]
    %v116 = vperm.slane %v114, 0
    %v120 = vsel %vm41, %v109, %v108
    %v121 = vsel %vm28, %v120, 0
    %123 = vmatpush.msra.mxu0 0.0
    %124 = vmatpush.msra.mxu0 0.0
    %125 = vmatpush.msra.mxu0 0.0
    %126 = vmatpush.msra.mxu0 0.0
    %127 = vmatpush.msra.mxu0 0.0
    %128 = vmatpush.msra.mxu0 0.0
    %129 = vmatpush.msra.mxu0 0.0
    %130 = vmatpush.msra.mxu0 0.0
    %131 = vmatpush.msra.mxu0 0.0
    %132 = vmatpush.msra.mxu0 0.0
    %133 = vmatpush.msra.mxu0 0.0
    %134 = vmatpush.msra.mxu0 0.0
    %135 = vmatpush.msra.mxu0 %v113
    %136 = vmatpush.msra.mxu0 %v112
    %137 = vmatpush.msra.mxu0 %v111
    %138 = vmatpush.msra.mxu0 %v110
    %139 = vmatmul.f32.gmra.mxu0 %v121
    %v140 = vpop.f32.mrf.mxu0
    %v141 = vadd.f32 %v116, %v140
    %142 = vdwg.mxu0
    %vm143 = vcmask 25600
    %144 = vst.msk [vmem:[#allocation2] sm:$0x3] %vm143, %v141
    // Predicated region
    $region18: #{tpu_custom_call.1} parent=1 // pred_check
      _
    $region19: #{tpu_custom_call.1} parent=1 // pred_check_branch
      %146 = sbr.rel (0) target = $region21
    $region20: #{tpu_custom_call.1} parent=1 // pred_region
      %148 = vsyncadd [#allocation3], 0
      %s150 = sshll.u32 [#allocation2], 4
      %s151 = int_to_ptr.vmem [resolvable:$true] %s150
      %s152 = sshll.u32 %s4, 4
      %s153 = int_to_ptr.hbm [resolvable:$true] %s152
      %155 = dma.vmem_to_hbm [thread:$0]  %s151, 32, %s153, [#allocation3]
    $region21: #{tpu_custom_call.1} parent=1 // pred_fallthru
      _
    // Predicated region
    $region22: #{tpu_custom_call.1} parent=1 // pred_check
      _
    $region23: #{tpu_custom_call.1} parent=1 // pred_check_branch
      %157 = sbr.rel (0) target = $region25
    $region24: #{tpu_custom_call.1} parent=1 // pred_region
      %159 = dma.done [#allocation3], 32
    $region25: #{tpu_custom_call.1} parent=1 // pred_fallthru
      _
    %160 = vsyncpa [#allocation3], 1

</llo_original>
